<compile_context>
chip_gen: v7x
topology: tpu7x:2x2x1
jax: 0.10.0
libtpu: 0.0.40
codegen_flags: <defaults>
</compile_context>

<pallas_src>
import functools

import jax
import jax.numpy as jnp
from jax import lax
from jax.experimental import pallas as pl
from jax.experimental.pallas import tpu as pltpu


def _ce_label_smooth_kernel(x_ref, t_ref, row_loss_ref, *, epsilon, num_classes):
    x = x_ref[...]                                   # (TB, C), native dtype
    t = t_ref[...]                                   # (TB, 1), int32

    # Row max and the one-hot pick are exact in the native dtype (bf16 stays
    # bf16 here; only exp / accumulation run in f32).
    m = jnp.max(x, axis=1, keepdims=True)                                # (TB, 1)
    class_ids = lax.broadcasted_iota(jnp.int32, x.shape, 1)              # (TB, C)
    x_t = jnp.sum(jnp.where(class_ids == t, x, jnp.zeros_like(x)),
                  axis=1, keepdims=True).astype(jnp.float32)             # (TB, 1)

    x32 = x.astype(jnp.float32)
    m32 = m.astype(jnp.float32)
    sum_x = jnp.sum(x32, axis=1, keepdims=True)                          # (TB, 1)
    lse = jnp.log(jnp.sum(jnp.exp(x32 - m32), axis=1, keepdims=True))    # (TB, 1)

    # row_loss = -(1-eps)*logp[t] - (eps/C)*sum_c(logp)
    #          = (m + lse) - (1-eps)*x[t] - (eps/C)*sum_c(x)
    row_loss_ref[...] = ((m32 + lse)
                         - (1.0 - epsilon) * x_t
                         - (epsilon / num_classes) * sum_x)              # (TB, 1)


def cross_entropy_label_smooth(inputs, targets, *, num_classes, epsilon=0.1,
                               block_b=None):
    """inputs: (B, C) float32/bfloat16 logits; targets: (B,) int labels -> scalar f32."""
    B, C = inputs.shape
    assert C == num_classes
    targets_2d = targets.reshape(B, 1).astype(jnp.int32)

    itemsize = jnp.dtype(inputs.dtype).itemsize
    # Sublane packing: 8 rows for 4-byte dtypes, 16 for bf16, 32 for int8/fp8.
    sublane = max(8, 32 // itemsize)

    if block_b is None:
        # ~4 MiB f32-equivalent logits tile per buffer: large enough to
        # amortize the ~0.35 us per-grid-step overhead and sit at ~85%+ of the
        # HBM roofline, small enough (see vmem_limit below) for all gens.
        budget_bytes = 4 * 1024 * 1024
        rows = budget_bytes // (C * 4)
        block_b = max(sublane, (rows // sublane) * sublane)
    block_b = max(sublane, (int(block_b) // sublane) * sublane)
    # Never use more rows than needed to cover the (sublane-padded) batch.
    block_b = min(block_b, pl.cdiv(B, sublane) * sublane)

    num_blocks = pl.cdiv(B, block_b)
    b_pad = num_blocks * block_b

    # VMEM footprint: 2x double-buffered logits tile + ~7x f32-sized compiler
    # temporaries (upcast, iota, compare/select, exp input/output) + headroom.
    # TODO(synk): vocab-scale C (a single sublane x C tile over the budget)
    # needs a class-axis grid with a streaming logsumexp; not implemented here.
    tile_in_bytes = block_b * C * itemsize
    tile_f32_bytes = block_b * C * 4
    vmem_limit = int(2 * tile_in_bytes + 7 * tile_f32_bytes + (8 << 20))
    vmem_limit = min(60 << 20, max(32 << 20, vmem_limit))

    kernel = functools.partial(
        _ce_label_smooth_kernel,
        epsilon=float(epsilon),
        num_classes=int(num_classes),
    )

    cost = pl.CostEstimate(
        flops=int(6 * B * C),
        transcendentals=int(B * C),
        bytes_accessed=int(B * C * itemsize + B * 4 + b_pad * 4),
    )

    row_losses = pl.pallas_call(
        kernel,
        out_shape=jax.ShapeDtypeStruct((b_pad, 1), jnp.float32),
        grid=(num_blocks,),
        in_specs=[
            pl.BlockSpec((block_b, C), lambda i: (i, 0)),   # logits tile (VMEM)
            pl.BlockSpec((block_b, 1), lambda i: (i, 0)),   # targets tile (VMEM)
        ],
        out_specs=pl.BlockSpec((block_b, 1), lambda i: (i, 0)),
        compiler_params=pltpu.CompilerParams(
            dimension_semantics=("parallel",),      # lets v7x's 2 TCs split the grid
            vmem_limit_bytes=vmem_limit),
        cost_estimate=cost,
    )(inputs, targets_2d)

    # Padded rows (>= B) are simply never read; mean-over-batch then sum == /B.
    return jnp.sum(row_losses[:B, 0]) / jnp.float32(B)


def _reference(inputs, targets, num_classes, epsilon=0.1):
    log_probs = jax.nn.log_softmax(inputs.astype(jnp.float32), axis=1)
    onehot = jax.nn.one_hot(targets, num_classes, dtype=jnp.float32)
    smooth = (1.0 - epsilon) * onehot + epsilon / num_classes
    return jnp.sum(jnp.mean(-smooth * log_probs, axis=0))


if __name__ == "__main__":
    B, C = 20, 48          # small batch, num_classes=48; B not a multiple of the tile
    key = jax.random.PRNGKey(0)
    k1, k2 = jax.random.split(key)
    inputs = jax.random.normal(k1, (B, C), dtype=jnp.float32)
    targets = jax.random.randint(k2, (B,), 0, C, dtype=jnp.int32)
    ref = _reference(inputs, targets, C, epsilon=0.1)

    # f32, forced small tile: block_b=8 -> 3 grid steps, last block padded.
    loss = cross_entropy_label_smooth(inputs, targets, num_classes=C,
                                      epsilon=0.1, block_b=8)
    loss = jax.block_until_ready(loss)
    assert jnp.allclose(loss, ref, atol=1e-4, rtol=1e-4), (loss, ref)

    # f32, auto-sized tile: single 24-row block (clamped to the padded batch).
    loss_auto = cross_entropy_label_smooth(inputs, targets, num_classes=C,
                                           epsilon=0.1)
    loss_auto = jax.block_until_ready(loss_auto)
    assert jnp.allclose(loss_auto, ref, atol=1e-4, rtol=1e-4), (loss_auto, ref)

    # bf16 storage path: block_b rounds to the bf16 sublane multiple (16);
    # max/pick run in bf16, exp/sums in f32 inside the kernel.
    inputs_bf16 = inputs.astype(jnp.bfloat16)
    ref_bf16 = _reference(inputs_bf16, targets, C, epsilon=0.1)
    loss_bf16 = cross_entropy_label_smooth(inputs_bf16, targets, num_classes=C,
                                           epsilon=0.1, block_b=16)
    loss_bf16 = jax.block_until_ready(loss_bf16)
    assert jnp.allclose(loss_bf16, ref_bf16, atol=1e-4, rtol=1e-4), (loss_bf16, ref_bf16)

    print("KERNEL_OK")
</pallas_src>

<mosaic_0001>
module attributes {stable_mosaic.version = 11 : i64} {
  func.func @_ce_label_smooth_kernel(%arg0: i32, %arg1: memref<8x48xf32, #tpu.memory_space<vmem>>, %arg2: memref<8x1xi32, #tpu.memory_space<vmem>>, %arg3: memref<8x1xf32, #tpu.memory_space<vmem>>) attributes {dimension_semantics = [#tpu.dimension_semantics<parallel>], iteration_bounds = array<i64: 3>, scalar_prefetch = 0 : i64, scratch_operands = 0 : i64, tpu.core_type = #tpu.core_type<tc>, window_params = [{transform_indices = @transform_0, window_bounds = array<i64: 8, 48>}, {transform_indices = @transform_1, window_bounds = array<i64: 8, 1>}, {transform_indices = @transform_2, window_bounds = array<i64: 8, 1>}]} {
    %c0 = arith.constant 0 : index
    %c0_0 = arith.constant 0 : index
    %0 = vector.load %arg1[%c0, %c0_0] : memref<8x48xf32, #tpu.memory_space<vmem>>, vector<8x48xf32>
    %c0_1 = arith.constant 0 : index
    %c0_2 = arith.constant 0 : index
    %1 = vector.load %arg2[%c0_1, %c0_2] : memref<8x1xi32, #tpu.memory_space<vmem>>, vector<8x1xi32>
    %cst = arith.constant dense<0xFF800000> : vector<8xf32>
    %2 = vector.multi_reduction <maximumf>, %0, %cst [1] : vector<8x48xf32> to vector<8xf32>
    %3 = vector.shape_cast %2 : vector<8xf32> to vector<8x1xf32>
    %4 = tpu.iota {dimensions = array<i32: 1>} : vector<8x48xi32>
    %5 = vector.broadcast %1 : vector<8x1xi32> to vector<8x48xi32>
    %6 = arith.cmpi eq, %4, %5 : vector<8x48xi32>
    %cst_3 = arith.constant 0.000000e+00 : f32
    %7 = vector.broadcast %cst_3 : f32 to vector<8x48xf32>
    %8 = arith.select %6, %0, %7 : vector<8x48xi1>, vector<8x48xf32>
    %cst_4 = arith.constant dense<0.000000e+00> : vector<8xf32>
    %9 = vector.multi_reduction <add>, %8, %cst_4 [1] : vector<8x48xf32> to vector<8xf32>
    %10 = vector.shape_cast %9 : vector<8xf32> to vector<8x1xf32>
    %cst_5 = arith.constant dense<0.000000e+00> : vector<8xf32>
    %11 = vector.multi_reduction <add>, %0, %cst_5 [1] : vector<8x48xf32> to vector<8xf32>
    %12 = vector.shape_cast %11 : vector<8xf32> to vector<8x1xf32>
    %13 = vector.broadcast %3 : vector<8x1xf32> to vector<8x48xf32>
    %14 = arith.subf %0, %13 : vector<8x48xf32>
    %15 = math.exp %14 : vector<8x48xf32>
    %cst_6 = arith.constant dense<0.000000e+00> : vector<8xf32>
    %16 = vector.multi_reduction <add>, %15, %cst_6 [1] : vector<8x48xf32> to vector<8xf32>
    %17 = vector.shape_cast %16 : vector<8xf32> to vector<8x1xf32>
    %18 = math.log %17 : vector<8x1xf32>
    %19 = arith.addf %3, %18 : vector<8x1xf32>
    %cst_7 = arith.constant 0.899999976 : f32
    %20 = vector.broadcast %cst_7 : f32 to vector<8x1xf32>
    %21 = arith.mulf %20, %10 : vector<8x1xf32>
    %22 = arith.subf %19, %21 : vector<8x1xf32>
    %cst_8 = arith.constant 0.00208333344 : f32
    %23 = vector.broadcast %cst_8 : f32 to vector<8x1xf32>
    %24 = arith.mulf %23, %12 : vector<8x1xf32>
    %25 = arith.subf %22, %24 : vector<8x1xf32>
    %c0_9 = arith.constant 0 : index
    %c0_10 = arith.constant 0 : index
    %26 = vector.load %arg3[%c0_9, %c0_10] : memref<8x1xf32, #tpu.memory_space<vmem>>, vector<8x1xf32>
    tpu.vector_store %arg3[%c0_9, %c0_10], %25 {strides = array<i32>} : memref<8x1xf32, #tpu.memory_space<vmem>>, vector<8x1xf32>,
    return
  }
  func.func @transform_0(%arg0: i32) -> (i32, i32) {
    %c0_i32 = arith.constant 0 : i32
    %c0_i32_0 = arith.constant 0 : i32
    return %arg0, %c0_i32 : i32, i32
  }
  func.func @transform_1(%arg0: i32) -> (i32, i32) {
    %c0_i32 = arith.constant 0 : i32
    %c0_i32_0 = arith.constant 0 : i32
    return %arg0, %c0_i32 : i32, i32
  }
  func.func @transform_2(%arg0: i32) -> (i32, i32) {
    %c0_i32 = arith.constant 0 : i32
    %c0_i32_0 = arith.constant 0 : i32
    return %arg0, %c0_i32 : i32, i32
  }
}

</mosaic_0001>

<llo_original>
// kernel: tpu_custom_call.1
$region0: #{tpu_custom_call.1}
  #allocation0 [shape = 'u32[]', space=smem, size = 0x4, offset = 0x4, fixed_abs, tag = 'smem constant byte address 0x4 - core index']
  #allocation1 [shape = 'u32[144,128]{1,0:T(1,128)}', space=vmem, size = 0x12000, scoped, tag = 'internal scratch']
  %s0 = inlined_call_operand.vmem [shape: f32[20,48], index: 0, kind: input, shape index: {}]
  %s1 = inlined_call_operand.vmem [shape: s32[20,1], index: 1, kind: input, shape index: {}]
  %s2 = inlined_call_operand.vmem [shape: f32[24,1], index: 2, kind: output, shape index: {}]
  %s3 = sld [smem:[#allocation0]]
  $region41: #{tpu_custom_call.1} parent=0
    _
  %s5 = ssub.s32 1, %s3
  %s6 = scalar_select 0, %s5, %s3
  loop: start=0, step=1, limit=5
  $region2: #{tpu_custom_call.1} parent=0 // loop_pre_header
    _
  $region3: #{tpu_custom_call.1} parent=0 // loop_header
    %s8 = sphi 0, %s12
    %p9 = scmp.ge.s32.totalorder %s8, 5
    %s18 = sphi 0, %s20
    %s21 = sphi 0, %s18
    %s22 = sphi 0, %s21
    %s38 = sphi 0, %s22
    %s44 = sphi 0, %s46
    %s47 = sphi 0, %s44
    %s48 = sphi 0, %s47
    %s64 = sphi 0, %s48
    %s70 = sphi 0, %s72
    %s73 = sphi 0, %s70
    %s74 = sphi 0, %s73
    %s90 = sphi 0, %s74
  $region4: #{tpu_custom_call.1} parent=0 // loop_header_branch
    %11 = sbr.rel (%p9) target = $region8
  $region5: #{tpu_custom_call.1} parent=0 // loop_body
    %s13 = ssub.s32 %s8, 1
    %s14 = ssub.s32 %s8, 2
    %s15 = sadd.s32 %s8, 1
    %s16 = ssub.s32 %s8, %s15
    %p17 = scmp.eq.s32.totalorder %s16, 0
    %s19 = sadd.s32 %s18, 1
    %s20 = scalar_select %p17, %s18, %s19
    %p23 = pneg %p17
    %p24 = scmp.eq.s32.totalorder %s8, 2
    %p25 = por %p23, %p24
    %p26 = scmp.ne.s32.totalorder %s18, %s21
    %p27 = scmp.eq.s32.totalorder %s8, 0
    %p28 = por %p26, %p27
    %p29 = scmp.ne.s32.totalorder %s18, %s21
    %p30 = scmp.eq.s32.totalorder %s13, 2
    %p31 = por %p29, %p30
    %p32 = scmp.ne.s32.totalorder %s21, %s22
    %p33 = scmp.eq.s32.totalorder %s13, 0
    %p34 = por %p32, %p33
    %p35 = scmp.ne.s32.totalorder %s21, %s22
    %p36 = scmp.eq.s32.totalorder %s14, 2
    %p37 = por %p35, %p36
    %p39 = scmp.ne.s32.totalorder %s22, %s38
    %p40 = scmp.eq.s32.totalorder %s14, 0
    %p41 = por %p39, %p40
    %s42 = ssub.s32 %s8, %s15
    %p43 = scmp.eq.s32.totalorder %s42, 0
    %s45 = sadd.s32 %s44, 1
    %s46 = scalar_select %p43, %s44, %s45
    %p49 = pneg %p43
    %p50 = scmp.eq.s32.totalorder %s8, 2
    %p51 = por %p49, %p50
    %p52 = scmp.ne.s32.totalorder %s44, %s47
    %p53 = scmp.eq.s32.totalorder %s8, 0
    %p54 = por %p52, %p53
    %p55 = scmp.ne.s32.totalorder %s44, %s47
    %p56 = scmp.eq.s32.totalorder %s13, 2
    %p57 = por %p55, %p56
    %p58 = scmp.ne.s32.totalorder %s47, %s48
    %p59 = scmp.eq.s32.totalorder %s13, 0
    %p60 = por %p58, %p59
    %p61 = scmp.ne.s32.totalorder %s47, %s48
    %p62 = scmp.eq.s32.totalorder %s14, 2
    %p63 = por %p61, %p62
    %p65 = scmp.ne.s32.totalorder %s48, %s64
    %p66 = scmp.eq.s32.totalorder %s14, 0
    %p67 = por %p65, %p66
    %s68 = ssub.s32 %s8, %s15
    %p69 = scmp.eq.s32.totalorder %s68, 0
    %s71 = sadd.s32 %s70, 1
    %s72 = scalar_select %p69, %s70, %s71
    %p75 = pneg %p69
    %p76 = scmp.eq.s32.totalorder %s8, 2
    %p77 = por %p75, %p76
    %p78 = scmp.ne.s32.totalorder %s70, %s73
    %p79 = scmp.eq.s32.totalorder %s8, 0
    %p80 = por %p78, %p79
    %p81 = scmp.ne.s32.totalorder %s70, %s73
    %p82 = scmp.eq.s32.totalorder %s13, 2
    %p83 = por %p81, %p82
    %p84 = scmp.ne.s32.totalorder %s73, %s74
    %p85 = scmp.eq.s32.totalorder %s13, 0
    %p86 = por %p84, %p85
    %p87 = scmp.ne.s32.totalorder %s73, %s74
    %p88 = scmp.eq.s32.totalorder %s14, 2
    %p89 = por %p87, %p88
    %p91 = scmp.ne.s32.totalorder %s74, %s90
    %p92 = scmp.eq.s32.totalorder %s14, 0
    %p93 = por %p91, %p92
    %p94 = scmp.le.s32.totalorder 1, %s8
    %p95 = scmp.lt.s32.totalorder %s8, 4
    %p96 = pnand %p94, %p95
    %p97 = pneg %p96
    // Predicated region
    $region9: #{tpu_custom_call.1} parent=5 // pred_check
      _
    $region10: #{tpu_custom_call.1} parent=5 // pred_check_branch
      %99 = sbr.rel (%p96) target = $region12
    $region11: #{tpu_custom_call.1} parent=5 // pred_region
      %s100 = ssub.s32 %s8, 1
    $region12: #{tpu_custom_call.1} parent=5 // pred_fallthru
      _
    %p101 = scmp.lt.s32.totalorder %s8, 3
    // Predicated region
    $region13: #{tpu_custom_call.1} parent=5 // pred_check
      %p102 = pneg %p101
    $region14: #{tpu_custom_call.1} parent=5 // pred_check_branch
      %104 = sbr.rel (%p102) target = $region16
    $region15: #{tpu_custom_call.1} parent=5 // pred_region
      // Predicated region
      $region17: #{tpu_custom_call.1} parent=15 // pred_check
        %p105 = pneg %p28
      $region18: #{tpu_custom_call.1} parent=15 // pred_check_branch
        %107 = sbr.rel (%p105) target = $region20
      $region19: #{tpu_custom_call.1} parent=15 // pred_region
        %p108 = scmp.lt.s32.totalorder %s8, 2
        %s109 = scalar_select %p108, %s8, 2
        %s110 = smul.addr %s109, 8
        %s111 = scalar_lea.vmem %s0, %s110
      $region20: #{tpu_custom_call.1} parent=15 // pred_fallthru
        _
      // Predicated region
      $region21: #{tpu_custom_call.1} parent=15 // pred_check
        %p112 = pneg %p54
      $region22: #{tpu_custom_call.1} parent=15 // pred_check_branch
        %114 = sbr.rel (%p112) target = $region24
      $region23: #{tpu_custom_call.1} parent=15 // pred_region
        %p115 = scmp.lt.s32.totalorder %s8, 2
        %s116 = scalar_select %p115, %s8, 2
        %s117 = smul.addr %s116, 8
        %s118 = scalar_lea.vmem %s1, %s117
      $region24: #{tpu_custom_call.1} parent=15 // pred_fallthru
        _
    $region16: #{tpu_custom_call.1} parent=5 // pred_fallthru
      _
    %p119 = scmp.le.s32.totalorder 1, %s8
    %p120 = scmp.lt.s32.totalorder %s8, 4
    %p121 = pnand %p119, %p120
    %p122 = pneg %p121
    // Predicated region
    $region25: #{tpu_custom_call.1} parent=5 // pred_check
      _
    $region26: #{tpu_custom_call.1} parent=5 // pred_check_branch
      %124 = sbr.rel (%p121) target = $region28
    $region27: #{tpu_custom_call.1} parent=5 // pred_region
      %s125 = ssub.s32 %s8, 1
      %p126 = scmp.lt.s32.totalorder %s13, 2
      %s127 = scalar_select %p126, %s13, 2
      %s128 = smul.addr %s127, 8
      %s129 = scalar_lea.vmem %s0, %s128
      %p130 = pneg %p34
      %p131 = pneg %p31
      %p132 = scmp.lt.s32.totalorder %s13, 2
      %s133 = scalar_select %p132, %s13, 2
      %s134 = smul.addr %s133, 8
      %s135 = scalar_lea.vmem %s1, %s134
      %p136 = pneg %p60
      %p137 = pneg %p57
      %p138 = pneg %p86
      %p139 = pneg %p83
      %p140 = scmp.lt.s32.totalorder %s13, 2
      %s141 = scalar_select %p140, %s13, 2
      %s142 = smul.addr %s141, 8
      %s143 = scalar_lea.vmem %s2, %s142
      %p144 = scmp.lt.s32.totalorder %s13, 2
      %s145 = scalar_select %p144, %s13, 2
      %s146 = smul.addr %s145, 8
      %s147 = scalar_lea.vmem %s0, %s146
      %p148 = scmp.lt.s32.totalorder %s13, 2
      %s149 = scalar_select %p148, %s13, 2
      %s150 = smul.addr %s149, 8
      %s151 = scalar_lea.vmem %s1, %s150
      %p152 = scmp.lt.s32.totalorder %s13, 2
      %s153 = scalar_select %p152, %s13, 2
      %s154 = smul.addr %s153, 8
      %s155 = scalar_lea.vmem %s2, %s154
      %v156 = vld [vmem:[%s147] sm:$0xff]
      %v157 = vld [vmem:[%s151] sm:$0xff]
      %vm158 = vcmask 392192
      %v159 = vsel %vm158, %v156, -inf
      %160 = vmax.xlane.f32.xlu0 %v159
      %v161 = vpop.xlane.xlu0 %160
      %v162 = vlaneseq
      %v163 = vand.u32 %v162, 127
      %164 = vset.pattern.permute.xlu0 0
      %165 = vperm.xlu0 %164, %v157
      %v166 = vpop.permute.xlu0 %165
      %vm167 = vcmp.eq.s32.totalorder %v163, %v166
      %v168 = vsel %vm167, %v156, 0.0
      %v169 = vsel %vm158, %v168, 0.0
      %170 = vadd.xlane.f32.xlu0 %v169
      %v171 = vpop.xlane.xlu0 %170
      %v172 = vsel %vm158, %v156, 0.0
      %173 = vadd.xlane.f32.xlu0 %v172
      %v174 = vpop.xlane.xlu0 %173
      %v175 = vsub.f32 %v156, %v161
      %v176 = vmul.f32 %v175, 1.442695
      %v177 = vpow.pop %v176
      %v178 = vsel %vm158, %v177, 0.0
      %179 = vadd.xlane.f32.xlu0 %v178
      %v180 = vpop.xlane.xlu0 %179
      %v181 = vlog2.pop %v180
      %v182 = vmul.f32 %v181, 0.6931472
      %v183 = vadd.f32 %v161, %v182
      %v184 = vmul.f32 %v171, 0.9
      %v185 = vsub.f32 %v183, %v184
      %v186 = vmul.f32 %v174, 0.0020833334
      %v187 = vsub.f32 %v185, %v186
      %vm188 = vcmask 7168
      %189 = vst.msk [vmem:[%s155] sm:$0xff] %vm188, %v187
      %p190 = scmp.lt.s32.totalorder %s13, 2
      %s191 = scalar_select %p190, %s13, 2
      %s192 = smul.addr %s191, 8
      %s193 = scalar_lea.vmem %s2, %s192
      // Predicated region
      $region29: #{tpu_custom_call.1} parent=27 // pred_check
        %p194 = pneg %p83
      $region30: #{tpu_custom_call.1} parent=27 // pred_check_branch
        %196 = sbr.rel (%p194) target = $region32
      $region31: #{tpu_custom_call.1} parent=27 // pred_region
        _
      $region32: #{tpu_custom_call.1} parent=27 // pred_fallthru
        _
    $region28: #{tpu_custom_call.1} parent=5 // pred_fallthru
      _
    %p197 = scmp.le.s32.totalorder 2, %s8
    // Predicated region
    $region33: #{tpu_custom_call.1} parent=5 // pred_check
      %p198 = pneg %p197
    $region34: #{tpu_custom_call.1} parent=5 // pred_check_branch
      %200 = sbr.rel (%p198) target = $region36
    $region35: #{tpu_custom_call.1} parent=5 // pred_region
      %s201 = ssub.s32 %s8, 2
      // Predicated region
      $region37: #{tpu_custom_call.1} parent=35 // pred_check
        %p202 = pneg %p89
      $region38: #{tpu_custom_call.1} parent=35 // pred_check_branch
        %204 = sbr.rel (%p202) target = $region40
      $region39: #{tpu_custom_call.1} parent=35 // pred_region
        %p205 = scmp.lt.s32.totalorder %s14, 2
        %s206 = scalar_select %p205, %s14, 2
        %s207 = smul.addr %s206, 8
        %s208 = scalar_lea.vmem %s2, %s207
      $region40: #{tpu_custom_call.1} parent=35 // pred_fallthru
        _
    $region36: #{tpu_custom_call.1} parent=5 // pred_fallthru
      _
  $region6: #{tpu_custom_call.1} parent=0 // loop_footer
    %s12 = sadd.s32 1, %s8
  $region7: #{tpu_custom_call.1} parent=0 // loop_footer_branch
    %7 = sbr.rel target = $region3
  $region8: #{tpu_custom_call.1} parent=0 // loop_exit
    _

</llo_original>
